<compile_context>
chip_gen: v6e
topology: v6e:2x2x1
jax: 0.10.0
libtpu: 0.0.40
codegen_flags: <defaults>
</compile_context>

<pallas_src>
import jax
import jax.numpy as jnp
from jax.experimental import pallas as pl
from jax.experimental.pallas import tpu as pltpu


def _attention_kernel(b_ref, x_ref, w_ref, o_ref):
    """One grid step = TB batch rows.

    b_ref: (1, 1)     SMEM f32 scalar bias of nn.Linear(D, 1)
    x_ref: (TB, L, D) VMEM input tile (f32 or bf16)
    w_ref: (D, 1)     VMEM linear weight as a column (x.dtype)
    o_ref: (TB, D)    VMEM output tile
    """
    x = x_ref[...]                                   # (TB, L, D)
    tb, L, D = x.shape

    # scores[b, l] = relu(<x[b, l, :], w> + bias)
    # Contract over D on the MXU (vector-extended slot; otherwise idle) instead of
    # a lane reduction on the XLU. L is a multiple of 8 here so the reshape is a
    # free sublane re-chunking.
    x2 = x.reshape(tb * L, D)
    s = jnp.dot(x2, w_ref[...], preferred_element_type=jnp.float32)  # (TB*L, 1) f32
    s = jnp.maximum(s + b_ref[0, 0], 0.0)
    s = s.reshape(tb, L, 1)                          # sublane-major scores

    # Softmax over the sequence axis (axis=1). Exact division for parity with the
    # PyTorch module (approx reciprocal previously broke the tolerance).
    m = jnp.max(s, axis=1, keepdims=True)            # (TB, 1, 1)
    e = jnp.exp(s - m)                               # (TB, L, 1)
    denom = jnp.sum(e, axis=1, keepdims=True)        # (TB, 1, 1)
    wts = e / denom                                  # (TB, L, 1) f32

    # Weighted sum over L: (TB,L,1) weights broadcast over the lane (D) axis; the
    # reduction over L is sublane-side VPU adds (no XLU lane reduce). f32 accum.
    out = jnp.sum(x * wts, axis=1)                   # (TB, D) f32
    o_ref[...] = out.astype(o_ref.dtype)


def _round_up(v, m):
    return -(-v // m) * m


def _choose_batch_tile(B, L, D, itemsize,
                       target_x_bytes=12 * 1024 * 1024,
                       vmem_budget_bytes=40 * 1024 * 1024):
    """Pick the per-step batch tile TB.

    - multiple of 8 (sublane-dense (TB, D) output stores),
    - ~12 MiB per (double-buffered) x tile so the ~0.35 us/step fixed cost stays
      small even at v7x's ~3.2 TB/s HBM,
    - budgets ALL per-step buffers (2x x tile + f32 multiply-reduce temp + out
      tiles) against ~40 MiB so it fits v7x's 64 MiB per-core VMEM with headroom,
    - >= 2 grid blocks when B allows it (megacore sharding on v7x).
    """
    if B < 8:
        return int(B)                      # full-dim block; no ragged tail at all
    row_x = max(L * D * itemsize, 1)
    row_all = 2 * row_x + L * D * 4 + 2 * D * 4 + 4 * L * 4
    tb = target_x_bytes // row_x
    tb = min(tb, vmem_budget_bytes // row_all)
    tb = max(8, (tb // 8) * 8)
    if B >= 16:                            # keep at least 2 blocks for 2 TCs
        tb = min(tb, _round_up(-(-B // 2), 8))
    tb = min(tb, _round_up(B, 8))
    return int(tb)


def attention_forward(x, weight, bias, *, batch_tile=None):
    """Pallas forward pass of the Attention module.

    x:      (B, L, D)  input sequence (f32 or bf16)
    weight: (1, D)     nn.Linear(D, 1).weight
    bias:   (1,)       nn.Linear(D, 1).bias
    returns (B, D)
    """
    B, L, D = x.shape
    tb = batch_tile if batch_tile is not None else _choose_batch_tile(
        B, L, D, x.dtype.itemsize)
    n_blocks = -(-B // tb)

    w_col = jnp.asarray(weight, x.dtype).reshape(D, 1)   # (D, 1) column for the MXU
    b_smem = jnp.asarray(bias, jnp.float32).reshape(1, 1)

    # TODO(synk): for very long sequences (L*D per row in the MiB range) add an
    # inner "arbitrary" grid axis over L with an online-softmax accumulator; and
    # for D << 128 the lane axis is under-utilized (would need a packed layout).
    return pl.pallas_call(
        _attention_kernel,
        out_shape=jax.ShapeDtypeStruct((B, D), x.dtype),
        grid_spec=pltpu.PrefetchScalarGridSpec(
            num_scalar_prefetch=0,
            grid=(n_blocks,),
            in_specs=[
                pl.BlockSpec(memory_space=pltpu.MemorySpace.SMEM),  # bias scalar
                pl.BlockSpec((tb, L, D), lambda i: (i, 0, 0)),      # x batch tile
                pl.BlockSpec((D, 1), lambda i: (0, 0)),             # weight column
            ],
            out_specs=pl.BlockSpec((tb, D), lambda i: (i, 0)),
        ),
        compiler_params=pltpu.CompilerParams(
            dimension_semantics=("parallel",),
            # Below v7x's 64 MiB per-core physical VMEM, leaving headroom for
            # compiler scratch; well under 128 MiB on v5e/v6e.
            vmem_limit_bytes=48 * 1024 * 1024,
        ),
    )(b_smem, x, w_col)


def _reference(x, weight, bias):
    """Plain-JAX reference mirroring the PyTorch module exactly."""
    scores = jnp.einsum("bld,od->blo", x, weight) + bias      # (B, L, 1)
    scores = jax.nn.relu(scores)
    weights = jax.nn.softmax(scores[..., 0], axis=1)          # (B, L)
    return jnp.sum(x * weights[..., None], axis=1)            # (B, D)


if __name__ == "__main__":
    key = jax.random.PRNGKey(0)
    kx, kw, kb, kx2 = jax.random.split(key, 4)

    B, L, D = 2, 8, 32
    x = jax.random.normal(kx, (B, L, D), dtype=jnp.float32)
    # Deterministic nn.Linear(D, 1)-shaped parameters.
    bound = 1.0 / (D ** 0.5)
    weight = jax.random.uniform(kw, (1, D), minval=-bound, maxval=bound,
                                dtype=jnp.float32)
    bias = jax.random.uniform(kb, (1,), minval=-bound, maxval=bound,
                              dtype=jnp.float32)

    out = jax.block_until_ready(attention_forward(x, weight, bias))
    ref = _reference(x, weight, bias)
    assert out.shape == (B, D)
    assert jnp.allclose(out, ref, atol=1e-4, rtol=1e-4), "mismatch vs reference"

    # Multi-block + ragged-tail path (no wrapper pad; tail handled by clipping).
    B2 = 20
    x2 = jax.random.normal(kx2, (B2, L, D), dtype=jnp.float32)
    out2 = jax.block_until_ready(attention_forward(x2, weight, bias, batch_tile=16))
    ref2 = _reference(x2, weight, bias)
    assert out2.shape == (B2, D)
    assert jnp.allclose(out2, ref2, atol=1e-4, rtol=1e-4), "mismatch (ragged batch)"

    print("KERNEL_OK")
</pallas_src>

<mosaic_0001>
module attributes {stable_mosaic.version = 11 : i64} {
  func.func @_attention_kernel(%arg0: i32, %arg1: memref<1x1xf32, #tpu.memory_space<smem>>, %arg2: memref<2x8x32xf32, #tpu.memory_space<vmem>>, %arg3: memref<32x1xf32, #tpu.memory_space<vmem>>, %arg4: memref<2x32xf32, #tpu.memory_space<vmem>>) attributes {dimension_semantics = [#tpu.dimension_semantics<parallel>], iteration_bounds = array<i64: 1>, scalar_prefetch = 0 : i64, scratch_operands = 0 : i64, tpu.core_type = #tpu.core_type<tc>, window_params = [{transform_indices = @transform_0, window_bounds = array<i64: 1, 1>}, {transform_indices = @transform_1, window_bounds = array<i64: 2, 8, 32>}, {pipeline_mode = #tpu.pipeline_mode<synchronous>, transform_indices = @transform_2, window_bounds = array<i64: 32, 1>}, {transform_indices = @transform_3, window_bounds = array<i64: 2, 32>}]} {
    %c0 = arith.constant 0 : index
    %c0_0 = arith.constant 0 : index
    %c0_1 = arith.constant 0 : index
    %0 = vector.load %arg2[%c0, %c0_0, %c0_1] : memref<2x8x32xf32, #tpu.memory_space<vmem>>, vector<2x8x32xf32>
    %1 = vector.shape_cast %0 : vector<2x8x32xf32> to vector<16x32xf32>
    %c0_2 = arith.constant 0 : index
    %c0_3 = arith.constant 0 : index
    %2 = vector.load %arg3[%c0_2, %c0_3] : memref<32x1xf32, #tpu.memory_space<vmem>>, vector<32x1xf32>
    %cst = arith.constant dense<0.000000e+00> : vector<16x1xf32>
    %3 = tpu.matmul %1, %2, %cst {dimension_numbers = #tpu.dot_dimension_numbers<[1], [0], [0], [1], [0, 0, 1, 1], [], []>} : vector<16x32xf32>, vector<32x1xf32>, vector<16x1xf32> -> vector<16x1xf32>
    %c0_4 = arith.constant 0 : index
    %c0_5 = arith.constant 0 : index
    %4 = memref.load %arg1[%c0_4, %c0_5] : memref<1x1xf32, #tpu.memory_space<smem>>
    %5 = vector.broadcast %4 : f32 to vector<16x1xf32>
    %6 = arith.addf %3, %5 : vector<16x1xf32>
    %cst_6 = arith.constant 0.000000e+00 : f32
    %7 = vector.broadcast %cst_6 : f32 to vector<16x1xf32>
    %8 = arith.maximumf %6, %7 : vector<16x1xf32>
    %9 = vector.shape_cast %8 : vector<16x1xf32> to vector<2x8x1xf32>
    %cst_7 = arith.constant dense<0xFF800000> : vector<2x1xf32>
    %10 = vector.multi_reduction <maximumf>, %9, %cst_7 [1] : vector<2x8x1xf32> to vector<2x1xf32>
    %11 = vector.shape_cast %10 : vector<2x1xf32> to vector<2x1x1xf32>
    %12 = vector.broadcast %11 : vector<2x1x1xf32> to vector<2x8x1xf32>
    %13 = arith.subf %9, %12 : vector<2x8x1xf32>
    %14 = math.exp %13 : vector<2x8x1xf32>
    %cst_8 = arith.constant dense<0.000000e+00> : vector<2x1xf32>
    %15 = vector.multi_reduction <add>, %14, %cst_8 [1] : vector<2x8x1xf32> to vector<2x1xf32>
    %16 = vector.shape_cast %15 : vector<2x1xf32> to vector<2x1x1xf32>
    %17 = vector.broadcast %16 : vector<2x1x1xf32> to vector<2x8x1xf32>
    %18 = arith.divf %14, %17 : vector<2x8x1xf32>
    %19 = vector.broadcast %18 : vector<2x8x1xf32> to vector<2x8x32xf32>
    %20 = arith.mulf %0, %19 : vector<2x8x32xf32>
    %cst_9 = arith.constant dense<0.000000e+00> : vector<2x32xf32>
    %21 = vector.multi_reduction <add>, %20, %cst_9 [1] : vector<2x8x32xf32> to vector<2x32xf32>
    %c0_10 = arith.constant 0 : index
    %c0_11 = arith.constant 0 : index
    %22 = vector.load %arg4[%c0_10, %c0_11] : memref<2x32xf32, #tpu.memory_space<vmem>>, vector<2x32xf32>
    tpu.vector_store %arg4[%c0_10, %c0_11], %21 {strides = array<i32>} : memref<2x32xf32, #tpu.memory_space<vmem>>, vector<2x32xf32>,
    return
  }
  func.func @transform_0(%arg0: i32) -> (i32, i32) {
    %c0_i32 = arith.constant 0 : i32
    %c0_i32_0 = arith.constant 0 : i32
    %c0_i32_1 = arith.constant 0 : i32
    return %c0_i32, %c0_i32_0 : i32, i32
  }
  func.func @transform_1(%arg0: i32) -> (i32, i32, i32) {
    %c0_i32 = arith.constant 0 : i32
    %c0_i32_0 = arith.constant 0 : i32
    %c0_i32_1 = arith.constant 0 : i32
    return %arg0, %c0_i32, %c0_i32_0 : i32, i32, i32
  }
  func.func @transform_2(%arg0: i32) -> (i32, i32) {
    %c0_i32 = arith.constant 0 : i32
    %c0_i32_0 = arith.constant 0 : i32
    %c0_i32_1 = arith.constant 0 : i32
    return %c0_i32, %c0_i32_0 : i32, i32
  }
  func.func @transform_3(%arg0: i32) -> (i32, i32) {
    %c0_i32 = arith.constant 0 : i32
    %c0_i32_0 = arith.constant 0 : i32
    return %arg0, %c0_i32 : i32, i32
  }
}

</mosaic_0001>

<llo_original>
// kernel: tpu_custom_call.1
$region0: #{tpu_custom_call.1}
  #allocation0 [shape = 'u32[]', space=smem, size = 0x4, offset = 0x4, fixed_abs, tag = 'smem constant byte address 0x4 - core index']
  #allocation1 [shape = 'u32[144,128]{1,0:T(1,128)}', space=vmem, size = 0x12000, scoped, tag = 'internal scratch']
  #allocation2 [shape = 'f32[1,1]{1,0:T(1,128)S(6)}', space=smem, size = 0x200, scoped, tag = 'scoped memory for tpu_custom_call.1']
  %s0 = inlined_call_operand.<no memory space> [shape: f32[1,1], index: 0, kind: input, shape index: {}]
  %s1 = inlined_call_operand.vmem [shape: f32[2,8,32], index: 1, kind: input, shape index: {}]
  %s2 = inlined_call_operand.vmem [shape: f32[32,1], index: 2, kind: input, shape index: {}]
  %s3 = inlined_call_operand.hbm [shape: f32[2,32], index: 3, kind: output, shape index: {}]
  %s4 = sld [smem:[#allocation0]]
  $region22: #{tpu_custom_call.1} parent=0
    _
  %s6 = ssub.s32 1, %s4
  %s7 = scalar_select 0, %s6, %s4
  %8 = sst [smem:[#allocation2]] %s0
  $region1: #{tpu_custom_call.1} parent=0
    #allocation3 [shape = 'u8[1024]{0}', space=vmem, size = 0x400, scoped, tag = 'output window, operand 0, single buffered']
    #allocation4 [shape = 's32[1]{0}', space=sflag, size = 0x4, scoped, tag = 'scoped memory for tpu_custom_call.1']
    %9 = vsyncpa [#allocation4], 0
    // Predicated region
    $region2: #{tpu_custom_call.1} parent=1 // pred_check
      _
    $region3: #{tpu_custom_call.1} parent=1 // pred_check_branch
      %11 = sbr.rel (0) target = $region5
    $region4: #{tpu_custom_call.1} parent=1 // pred_region
      _
    $region5: #{tpu_custom_call.1} parent=1 // pred_fallthru
      _
    // Predicated region
    $region6: #{tpu_custom_call.1} parent=1 // pred_check
      _
    $region7: #{tpu_custom_call.1} parent=1 // pred_check_branch
      %13 = sbr.rel (0) target = $region9
    $region8: #{tpu_custom_call.1} parent=1 // pred_region
      _
    $region9: #{tpu_custom_call.1} parent=1 // pred_fallthru
      _
    // Predicated region
    $region10: #{tpu_custom_call.1} parent=1 // pred_check
      _
    $region11: #{tpu_custom_call.1} parent=1 // pred_check_branch
      %15 = sbr.rel (0) target = $region13
    $region12: #{tpu_custom_call.1} parent=1 // pred_region
      _
    $region13: #{tpu_custom_call.1} parent=1 // pred_fallthru
      _
    %v16 = vld [vmem:[%s1] sm:$0xff]
    %v17 = vld [vmem:[%s1 + $0x8] sm:$0xff]
    %v18 = vld [vmem:[%s2] sm:$0xff]
    %v19 = vld [vmem:[%s2 + $0x8] sm:$0xff]
    %v20 = vld [vmem:[%s2 + $0x10] sm:$0xff]
    %v21 = vld [vmem:[%s2 + $0x18] sm:$0xff]
    %s22 = sld [smem:[#allocation2]]
    %v23 = vstv %s22
    %vm24 = vcmask 261120
    %v26 = vsel %vm24, %v16, 0
    %v29 = vsel %vm24, %v17, 0
    %31 = vmatprep.subr.mxu0 0.0
    %32 = vmatpush1.msra.mxu0 0.0
    %33 = vmatprep.subr.mxu0 0.0
    %34 = vmatpush1.msra.mxu0 0.0
    %35 = vmatprep.subr.mxu0 0.0
    %36 = vmatpush1.msra.mxu0 0.0
    %37 = vmatprep.subr.mxu0 0.0
    %38 = vmatpush1.msra.mxu0 0.0
    %39 = vmatprep.subr.mxu0 0.0
    %40 = vmatpush1.msra.mxu0 0.0
    %41 = vmatprep.subr.mxu0 0.0
    %42 = vmatpush1.msra.mxu0 0.0
    %43 = vmatprep.subr.mxu0 0.0
    %44 = vmatpush1.msra.mxu0 0.0
    %45 = vmatprep.subr.mxu0 0.0
    %46 = vmatpush1.msra.mxu0 0.0
    %47 = vmatprep.subr.mxu0 0.0
    %48 = vmatpush1.msra.mxu0 0.0
    %49 = vmatprep.subr.mxu0 0.0
    %50 = vmatpush1.msra.mxu0 0.0
    %51 = vmatprep.subr.mxu0 0.0
    %52 = vmatpush1.msra.mxu0 0.0
    %53 = vmatprep.subr.mxu0 0.0
    %54 = vmatpush1.msra.mxu0 0.0
    %55 = vmatprep.subr.mxu0 0.0
    %56 = vmatpush1.msra.mxu0 %v21
    %57 = vmatprep.subr.mxu0 0.0
    %58 = vmatpush1.msra.mxu0 %v20
    %59 = vmatprep.subr.mxu0 0.0
    %60 = vmatpush1.msra.mxu0 %v19
    %61 = vmatprep.subr.mxu0 0.0
    %62 = vmatpush1.msra.mxu0 %v18
    %63 = vmatprep.subr.mxu0 0.0
    %64 = vmatpush2.msra.mxu0 0.0
    %65 = vmatprep.subr.mxu0 0.0
    %66 = vmatpush2.msra.mxu0 0.0
    %67 = vmatprep.subr.mxu0 0.0
    %68 = vmatpush2.msra.mxu0 0.0
    %69 = vmatprep.subr.mxu0 0.0
    %70 = vmatpush2.msra.mxu0 0.0
    %71 = vmatprep.subr.mxu0 0.0
    %72 = vmatpush2.msra.mxu0 0.0
    %73 = vmatprep.subr.mxu0 0.0
    %74 = vmatpush2.msra.mxu0 0.0
    %75 = vmatprep.subr.mxu0 0.0
    %76 = vmatpush2.msra.mxu0 0.0
    %77 = vmatprep.subr.mxu0 0.0
    %78 = vmatpush2.msra.mxu0 0.0
    %79 = vmatprep.subr.mxu0 0.0
    %80 = vmatpush2.msra.mxu0 0.0
    %81 = vmatprep.subr.mxu0 0.0
    %82 = vmatpush2.msra.mxu0 0.0
    %83 = vmatprep.subr.mxu0 0.0
    %84 = vmatpush2.msra.mxu0 0.0
    %85 = vmatprep.subr.mxu0 0.0
    %86 = vmatpush2.msra.mxu0 0.0
    %87 = vmatprep.subr.mxu0 0.0
    %88 = vmatpush2.msra.mxu0 0.0
    %89 = vmatprep.subr.mxu0 0.0
    %90 = vmatpush2.msra.mxu0 0.0
    %91 = vmatprep.subr.mxu0 0.0
    %92 = vmatpush2.msra.mxu0 0.0
    %93 = vmatprep.subr.mxu0 0.0
    %94 = vmatpush2.msra.mxu0 0.0
    %95 = vmatprep.mubr.f32.mxu0 0.0
    %96 = vmatmul.mubr.f32.gmra.mxu0 %v26
    %v97 = vpop.f32.mrf.mxu0
    %v98 = vadd.f32 %v23, %v97
    %v99 = vpop.f32.mrf.mxu0
    %100 = vmatprep.mubr.f32.mxu0 0.0
    %101 = vmatmul.mubr.f32.gmra.mxu0 %v29
    %v102 = vpop.f32.mrf.mxu0
    %v103 = vadd.f32 %v23, %v102
    %v104 = vpop.f32.mrf.mxu0
    %105 = vdwg.mxu0
    %v106 = vmax.f32 %v98, 0.0
    %v107 = vmax.f32 %v103, 0.0
    %vm108 = vcmask 7168
    %v109 = vsel %vm108, %v106, -inf
    %v110 = vrot.slane %v109, 4
    %v111 = vmax.f32 %v109, %v110
    %v112 = vrot.slane %v111, 2
    %v113 = vmax.f32 %v111, %v112
    %v114 = vrot.slane %v113, 1
    %v115 = vmax.f32 %v113, %v114
    %v116 = vsel %vm108, %v107, -inf
    %v117 = vrot.slane %v116, 4
    %v118 = vmax.f32 %v116, %v117
    %v119 = vrot.slane %v118, 2
    %v120 = vmax.f32 %v118, %v119
    %v121 = vrot.slane %v120, 1
    %v122 = vmax.f32 %v120, %v121
    %v123 = vsub.f32 %v106, %v115
    %v124 = vsub.f32 %v107, %v122
    %v125 = vmul.f32 %v123, 1.442695
    %v126 = vpow.pop %v125
    %v127 = vmul.f32 %v124, 1.442695
    %v128 = vpow.pop %v127
    %v129 = vsel %vm108, %v126, 0.0
    %v130 = vrot.slane %v129, 4
    %v131 = vadd.f32 %v129, %v130
    %v132 = vrot.slane %v131, 2
    %v133 = vadd.f32 %v131, %v132
    %v134 = vrot.slane %v133, 1
    %v135 = vadd.f32 %v133, %v134
    %v136 = vsel %vm108, %v128, 0.0
    %v137 = vrot.slane %v136, 4
    %v138 = vadd.f32 %v136, %v137
    %v139 = vrot.slane %v138, 2
    %v140 = vadd.f32 %v138, %v139
    %v141 = vrot.slane %v140, 1
    %v142 = vadd.f32 %v140, %v141
    %v143 = vrcp.pop %v135
    %v144 = vmul.f32 %v126, %v143
    %v145 = vrcp.pop %v142
    %v146 = vmul.f32 %v128, %v145
    %148 = vset.pattern.permute.xlu0 0
    %149 = vperm.xlu0 %148, %v144
    %v150 = vpop.permute.xlu0 %149
    %153 = vset.pattern.permute.xlu0 0
    %154 = vperm.xlu0 %153, %v146
    %v155 = vpop.permute.xlu0 %154
    %v157 = vmul.f32 %v16, %v150
    %v158 = vmul.f32 %v17, %v155
    %v159 = vsel %vm24, %v157, 0.0
    %v160 = vrot.slane %v159, 4
    %v161 = vadd.f32 %v159, %v160
    %v162 = vrot.slane %v161, 2
    %v163 = vadd.f32 %v161, %v162
    %v164 = vrot.slane %v163, 1
    %v165 = vadd.f32 %v163, %v164
    %v166 = vsel %vm24, %v158, 0.0
    %v167 = vrot.slane %v166, 4
    %v168 = vadd.f32 %v166, %v167
    %v169 = vrot.slane %v168, 2
    %v170 = vadd.f32 %v168, %v169
    %v171 = vrot.slane %v170, 1
    %v172 = vadd.f32 %v170, %v171
    %vm175 = vcmask 1041409
    %v176 = vsel %vm175, %v172, %v165
    %vm178 = vcmask 254976
    %179 = vst.msk [vmem:[#allocation3] sm:$0x3] %vm178, %v176
    // Predicated region
    $region14: #{tpu_custom_call.1} parent=1 // pred_check
      _
    $region15: #{tpu_custom_call.1} parent=1 // pred_check_branch
      %181 = sbr.rel (0) target = $region17
    $region16: #{tpu_custom_call.1} parent=1 // pred_region
      %s183 = ssub.s32 32, 32
      %184 = vsyncadd [#allocation4], %s183
      %s186 = sshll.u32 [#allocation3], 4
      %s187 = int_to_ptr.vmem [resolvable:$true] %s186
      %189 = dma.vmem_to_hbm [thread:$0]  %s187, 32, %s3, [#allocation4]
    $region17: #{tpu_custom_call.1} parent=1 // pred_fallthru
      _
    // Predicated region
    $region18: #{tpu_custom_call.1} parent=1 // pred_check
      _
    $region19: #{tpu_custom_call.1} parent=1 // pred_check_branch
      %191 = sbr.rel (0) target = $region21
    $region20: #{tpu_custom_call.1} parent=1 // pred_region
      %192 = dma.done [#allocation4], 32
    $region21: #{tpu_custom_call.1} parent=1 // pred_fallthru
      _
    %193 = vsyncpa [#allocation4], 1

</llo_original>
